<compile_context>
chip_gen: v7x
topology: tpu7x:2x2x1
jax: 0.10.0
libtpu: 0.0.40
codegen_flags: <defaults>
</compile_context>

<pallas_src>
import jax
import jax.numpy as jnp
from jax.experimental import pallas as pl
from jax.experimental.pallas import tpu as pltpu

# ----- environment / ROS-param constants (deterministic, in-script) -----
STATE_DIM = 32          # env.observation_space.shape[0]
ACTION_DIM = 2          # env.action_space.shape[0]
HIDDEN = 32             # ActorNet hidden width
MIN_LINEAR_VELOCITY = 0.0
MAX_LINEAR_VELOCITY = 0.6
MAX_ANGULAR_VELOCITY = 1.0

# ----- packed parameter-slab layout (rows; lanes are always 128 wide) -----
_LANES = 128
_W1_OFF = 0              # rows   0:128  -> w1 zero-padded to (128, 128)
_W2_OFF = 128            # rows 128:256  -> w2 zero-padded to (128, 128)
_W3_OFF = 256            # rows 256:384  -> w3 zero-padded to (128, 128)
_TAIL_OFF = 384          # rows 384..388 -> b1, b2, b3, clamp_lo, clamp_hi
_SLAB_ROWS = 392         # padded to a multiple of 8 sublanes


def _ddpg_actor_kernel(p_ref, s_ref, o_ref):
    """Fused ActorNet MLP + OU-noise add + per-component clamp.

    p_ref: (392, 128) static parameter slab (weights, biases, clamp bounds)
    s_ref: (8, 128)   per-step slab (row 0 = padded state, row 1 = padded noise)
    o_ref: (1, 128)   lane-dense output; action lives in lanes 0:ACTION_DIM
    """
    # One aligned (8,128) load for all biases + clamp bounds, then cheap value slices.
    tail = p_ref[_TAIL_OFF:_TAIL_OFF + 8, :]
    b1, b2, b3 = tail[0:1, :], tail[1:2, :], tail[2:3, :]
    lo, hi = tail[3:4, :], tail[4:5, :]

    x = s_ref[0:1, :]          # (1, 128) padded state
    noise = s_ref[1:2, :]      # (1, 128) padded OU noise

    h1 = jnp.dot(x, p_ref[_W1_OFF:_W1_OFF + _LANES, :],
                 preferred_element_type=jnp.float32) + b1
    h1 = jnp.maximum(h1, 0.0)

    h2 = jnp.dot(h1, p_ref[_W2_OFF:_W2_OFF + _LANES, :],
                 preferred_element_type=jnp.float32) + b2
    h2 = jnp.maximum(h2, 0.0)

    a = jnp.tanh(jnp.dot(h2, p_ref[_W3_OFF:_W3_OFF + _LANES, :],
                         preferred_element_type=jnp.float32) + b3)

    # add exploration noise, then clamp (lo/hi are precomputed constant rows)
    o_ref[...] = jnp.clip(a + noise, lo, hi)


def pack_actor_params(params,
                      min_lin=MIN_LINEAR_VELOCITY,
                      max_lin=MAX_LINEAR_VELOCITY,
                      max_ang=MAX_ANGULAR_VELOCITY):
    """Build the static (392, 128) parameter slab.

    Called once per training update (weights are static during rollouts), so the
    per-env-step forward only moves the tiny (8, 128) step slab plus this resident
    slab through a total of 3 DMAs.
    """
    slab = jnp.zeros((_SLAB_ROWS, _LANES), jnp.float32)
    slab = slab.at[_W1_OFF:_W1_OFF + STATE_DIM, 0:HIDDEN].set(
        params["w1"].astype(jnp.float32))
    slab = slab.at[_W2_OFF:_W2_OFF + HIDDEN, 0:HIDDEN].set(
        params["w2"].astype(jnp.float32))
    slab = slab.at[_W3_OFF:_W3_OFF + HIDDEN, 0:ACTION_DIM].set(
        params["w3"].astype(jnp.float32))
    slab = slab.at[_TAIL_OFF + 0, 0:HIDDEN].set(params["b1"].reshape(-1).astype(jnp.float32))
    slab = slab.at[_TAIL_OFF + 1, 0:HIDDEN].set(params["b2"].reshape(-1).astype(jnp.float32))
    slab = slab.at[_TAIL_OFF + 2, 0:ACTION_DIM].set(params["b3"].reshape(-1).astype(jnp.float32))
    # clamp bounds: lane 0 -> [min_lin, max_lin], lane 1 -> [-max_ang, max_ang],
    # padded lanes -> [0, 0] (their pre-clip value is exactly 0, so they stay 0).
    lo = jnp.zeros((_LANES,), jnp.float32).at[0].set(min_lin).at[1].set(-max_ang)
    hi = jnp.zeros((_LANES,), jnp.float32).at[0].set(max_lin).at[1].set(max_ang)
    slab = slab.at[_TAIL_OFF + 3, :].set(lo)
    slab = slab.at[_TAIL_OFF + 4, :].set(hi)
    return slab


def pack_step_inputs(state, noise):
    """Build the per-step (8, 128) slab: row 0 = state, row 1 = OU noise."""
    state = jnp.asarray(state, jnp.float32)
    if state.ndim == 1:                       # input.unsqueeze(0)
        state = state[None, :]
    # The original module's view(-1) + clamp of indices 0/1 only makes sense for a
    # single state; enforce that contract here.
    assert state.shape == (1, STATE_DIM), state.shape
    step = jnp.zeros((8, _LANES), jnp.float32)
    step = step.at[0, :STATE_DIM].set(state[0])
    step = step.at[1, :ACTION_DIM].set(jnp.asarray(noise, jnp.float32).reshape(-1))
    return step


@jax.jit
def _ddpg_forward_packed(param_slab, step_slab):
    vmem = pl.BlockSpec(memory_space=pltpu.MemorySpace.VMEM)
    out = pl.pallas_call(
        _ddpg_actor_kernel,
        out_shape=jax.ShapeDtypeStruct((1, _LANES), jnp.float32),
        in_specs=[vmem, vmem],
        out_specs=vmem,
    )(param_slab, step_slab)
    # action.view(-1) restricted to the real action lanes
    return out[0, :ACTION_DIM]


def ddpg_forward(param_slab, state, noise):
    """Per env-step DDPG.forward (spatial_flag=False, add_noise=True)."""
    return _ddpg_forward_packed(param_slab, pack_step_inputs(state, noise))


def init_actor_params(key):
    """Deterministic ActorNet parameter init (small uniform, like torch Linear)."""
    k1, k2, k3, k4, k5, k6 = jax.random.split(key, 6)

    def unif(k, shape, fan_in):
        bound = 1.0 / jnp.sqrt(jnp.float32(fan_in))
        return jax.random.uniform(k, shape, jnp.float32, -bound, bound)

    return {
        "w1": unif(k1, (STATE_DIM, HIDDEN), STATE_DIM),
        "b1": unif(k2, (1, HIDDEN), STATE_DIM),
        "w2": unif(k3, (HIDDEN, HIDDEN), HIDDEN),
        "b2": unif(k4, (1, HIDDEN), HIDDEN),
        "w3": unif(k5, (HIDDEN, ACTION_DIM), HIDDEN),
        "b3": unif(k6, (1, ACTION_DIM), HIDDEN),
    }


def ou_noise(key, mu=0.0, theta=0.15, sigma=0.2, steps=3):
    """Deterministic Ornstein-Uhlenbeck noise sample, shape (1, ACTION_DIM)."""
    x = jnp.full((ACTION_DIM,), mu, jnp.float32)
    keys = jax.random.split(key, steps)
    for k in keys:
        dx = theta * (mu - x) + sigma * jax.random.normal(k, (ACTION_DIM,), jnp.float32)
        x = x + dx
    return x.reshape(1, ACTION_DIM)


def _reference_forward(state, params, noise):
    """Pure-JAX reference of the same forward pass."""
    if state.ndim == 1:
        state = state[None, :]
    h1 = jnp.maximum(state @ params["w1"] + params["b1"], 0.0)
    h2 = jnp.maximum(h1 @ params["w2"] + params["b2"], 0.0)
    a = jnp.tanh(h2 @ params["w3"] + params["b3"]) + noise
    a = a.reshape(-1)
    a0 = jnp.clip(a[0], MIN_LINEAR_VELOCITY, MAX_LINEAR_VELOCITY)
    a1 = jnp.clip(a[1], -MAX_ANGULAR_VELOCITY, MAX_ANGULAR_VELOCITY)
    return jnp.stack([a0, a1])


if __name__ == "__main__":
    root = jax.random.PRNGKey(0)
    k_params, k_state, k_noise = jax.random.split(root, 3)

    params = init_actor_params(k_params)
    # single robot observation (forward unsqueezes 1-D input)
    state = jax.random.normal(k_state, (STATE_DIM,), jnp.float32)
    noise = ou_noise(k_noise)

    # packed once per training update; reused every env step
    param_slab = jax.block_until_ready(pack_actor_params(params))

    action = jax.block_until_ready(ddpg_forward(param_slab, state, noise))

    ref = jax.block_until_ready(_reference_forward(state, params, noise))
    assert action.shape == (ACTION_DIM,)
    assert jnp.allclose(action, ref, atol=1e-5), (action, ref)

    print("KERNEL_OK")
</pallas_src>

<mosaic_0001>
module attributes {stable_mosaic.version = 11 : i64} {
  func.func @_ddpg_actor_kernel(%arg0: memref<392x128xf32, #tpu.memory_space<vmem>>, %arg1: memref<8x128xf32, #tpu.memory_space<vmem>>, %arg2: memref<1x128xf32, #tpu.memory_space<vmem>>) attributes {dimension_semantics = [], scalar_prefetch = 0 : i64, scratch_operands = 0 : i64, tpu.core_type = #tpu.core_type<tc>} {
    %c384 = arith.constant 384 : index
    %c0 = arith.constant 0 : index
    %0 = vector.load %arg0[%c384, %c0] : memref<392x128xf32, #tpu.memory_space<vmem>>, vector<8x128xf32>
    %1 = vector.extract_strided_slice %0 {offsets = [0, 0], sizes = [1, 128], strides = [1, 1]} : vector<8x128xf32> to vector<1x128xf32>
    %2 = vector.extract_strided_slice %0 {offsets = [1, 0], sizes = [1, 128], strides = [1, 1]} : vector<8x128xf32> to vector<1x128xf32>
    %3 = vector.extract_strided_slice %0 {offsets = [2, 0], sizes = [1, 128], strides = [1, 1]} : vector<8x128xf32> to vector<1x128xf32>
    %4 = vector.extract_strided_slice %0 {offsets = [3, 0], sizes = [1, 128], strides = [1, 1]} : vector<8x128xf32> to vector<1x128xf32>
    %5 = vector.extract_strided_slice %0 {offsets = [4, 0], sizes = [1, 128], strides = [1, 1]} : vector<8x128xf32> to vector<1x128xf32>
    %c0_0 = arith.constant 0 : index
    %c0_1 = arith.constant 0 : index
    %6 = vector.load %arg1[%c0_0, %c0_1] : memref<8x128xf32, #tpu.memory_space<vmem>>, vector<1x128xf32>
    %c1 = arith.constant 1 : index
    %c0_2 = arith.constant 0 : index
    %7 = vector.load %arg1[%c1, %c0_2] : memref<8x128xf32, #tpu.memory_space<vmem>>, vector<1x128xf32>
    %c0_3 = arith.constant 0 : index
    %c0_4 = arith.constant 0 : index
    %8 = vector.load %arg0[%c0_3, %c0_4] : memref<392x128xf32, #tpu.memory_space<vmem>>, vector<128x128xf32>
    %cst = arith.constant dense<0.000000e+00> : vector<1x128xf32>
    %9 = tpu.matmul %6, %8, %cst {dimension_numbers = #tpu.dot_dimension_numbers<[1], [0], [0], [1], [0, 0, 1, 1], [], []>} : vector<1x128xf32>, vector<128x128xf32>, vector<1x128xf32> -> vector<1x128xf32>
    %10 = arith.addf %9, %1 : vector<1x128xf32>
    %cst_5 = arith.constant 0.000000e+00 : f32
    %11 = vector.broadcast %cst_5 : f32 to vector<1x128xf32>
    %12 = arith.maximumf %10, %11 : vector<1x128xf32>
    %c128 = arith.constant 128 : index
    %c0_6 = arith.constant 0 : index
    %13 = vector.load %arg0[%c128, %c0_6] : memref<392x128xf32, #tpu.memory_space<vmem>>, vector<128x128xf32>
    %cst_7 = arith.constant dense<0.000000e+00> : vector<1x128xf32>
    %14 = tpu.matmul %12, %13, %cst_7 {dimension_numbers = #tpu.dot_dimension_numbers<[1], [0], [0], [1], [0, 0, 1, 1], [], []>} : vector<1x128xf32>, vector<128x128xf32>, vector<1x128xf32> -> vector<1x128xf32>
    %15 = arith.addf %14, %2 : vector<1x128xf32>
    %cst_8 = arith.constant 0.000000e+00 : f32
    %16 = vector.broadcast %cst_8 : f32 to vector<1x128xf32>
    %17 = arith.maximumf %15, %16 : vector<1x128xf32>
    %c256 = arith.constant 256 : index
    %c0_9 = arith.constant 0 : index
    %18 = vector.load %arg0[%c256, %c0_9] : memref<392x128xf32, #tpu.memory_space<vmem>>, vector<128x128xf32>
    %cst_10 = arith.constant dense<0.000000e+00> : vector<1x128xf32>
    %19 = tpu.matmul %17, %18, %cst_10 {dimension_numbers = #tpu.dot_dimension_numbers<[1], [0], [0], [1], [0, 0, 1, 1], [], []>} : vector<1x128xf32>, vector<128x128xf32>, vector<1x128xf32> -> vector<1x128xf32>
    %20 = arith.addf %19, %3 : vector<1x128xf32>
    %21 = math.tanh %20 : vector<1x128xf32>
    %22 = arith.addf %21, %7 : vector<1x128xf32>
    %23 = arith.maximumf %4, %22 : vector<1x128xf32>
    %24 = arith.minimumf %5, %23 : vector<1x128xf32>
    %c0_11 = arith.constant 0 : index
    %c0_12 = arith.constant 0 : index
    %25 = vector.load %arg2[%c0_11, %c0_12] : memref<1x128xf32, #tpu.memory_space<vmem>>, vector<1x128xf32>
    tpu.vector_store %arg2[%c0_11, %c0_12], %24 {strides = array<i32>} : memref<1x128xf32, #tpu.memory_space<vmem>>, vector<1x128xf32>,
    return
  }
}

</mosaic_0001>

<llo_original>
// kernel: _ddpg_forward_packed.1
$region0: #{_ddpg_forward_packed.1}
  #allocation0 [shape = 'u32[]', space=smem, size = 0x4, offset = 0x4, fixed_abs, tag = 'smem constant byte address 0x4 - core index']
  #allocation1 [shape = 'u32[144,128]{1,0:T(1,128)}', space=vmem, size = 0x12000, scoped, tag = 'internal scratch']
  %s0 = inlined_call_operand.hbm [shape: f32[392,128], index: 0, kind: input, shape index: {}]
  %s1 = inlined_call_operand.hbm [shape: f32[8,128], index: 1, kind: input, shape index: {}]
  %s2 = inlined_call_operand.vmem [shape: f32[1,128], index: 2, kind: output, shape index: {}]
  %s3 = sld [smem:[#allocation0]]
  $region26: #{_ddpg_forward_packed.1} parent=0
    _
  %s5 = ssub.s32 1, %s3
  %s6 = scalar_select 0, %s5, %s3
  $region1: #{_ddpg_forward_packed.1} parent=0
    #allocation2 [shape = 'u8[200704]{0}', space=vmem, size = 0x31000, scoped, tag = 'input window, operand 0, single buffered']
    #allocation3 [shape = 's32[1]{0}', space=sflag, size = 0x4, scoped, tag = 'scoped memory for _ddpg_forward_packed.1']
    #allocation4 [shape = 'u8[4096]{0}', space=vmem, size = 0x1000, scoped, tag = 'input window, operand 1, single buffered']
    #allocation5 [shape = 's32[1]{0}', space=sflag, size = 0x4, scoped, tag = 'scoped memory for _ddpg_forward_packed.1']
    %7 = vsyncpa [#allocation3], 0
    %8 = vsyncpa [#allocation5], 0
    // Predicated region
    $region2: #{_ddpg_forward_packed.1} parent=1 // pred_check
      _
    $region3: #{_ddpg_forward_packed.1} parent=1 // pred_check_branch
      %10 = sbr.rel (0) target = $region5
    $region4: #{_ddpg_forward_packed.1} parent=1 // pred_region
      %s12 = ssub.s32 6272, 6272
      %13 = vsyncadd [#allocation3], %s12
      %s14 = sshll.u32 [#allocation2], 4
      %s15 = int_to_ptr.vmem [resolvable:$true] %s14
      %20 = dma.hbm_to_vmem [thread:$0]  %s0, 6272, %s15, [#allocation3], 128, 128, 8
    $region5: #{_ddpg_forward_packed.1} parent=1 // pred_fallthru
      _
    // Predicated region
    $region6: #{_ddpg_forward_packed.1} parent=1 // pred_check
      _
    $region7: #{_ddpg_forward_packed.1} parent=1 // pred_check_branch
      %22 = sbr.rel (0) target = $region9
    $region8: #{_ddpg_forward_packed.1} parent=1 // pred_region
      %s24 = ssub.s32 128, 128
      %25 = vsyncadd [#allocation5], %s24
      %s27 = sshll.u32 [#allocation4], 4
      %s28 = int_to_ptr.vmem [resolvable:$true] %s27
      %30 = dma.hbm_to_vmem [thread:$0]  %s1, 128, %s28, [#allocation5]
    $region9: #{_ddpg_forward_packed.1} parent=1 // pred_fallthru
      _
    // Predicated region
    $region10: #{_ddpg_forward_packed.1} parent=1 // pred_check
      _
    $region11: #{_ddpg_forward_packed.1} parent=1 // pred_check_branch
      %32 = sbr.rel (0) target = $region13
    $region12: #{_ddpg_forward_packed.1} parent=1 // pred_region
      %33 = dma.done [#allocation3], 6272
    $region13: #{_ddpg_forward_packed.1} parent=1 // pred_fallthru
      _
    // Predicated region
    $region14: #{_ddpg_forward_packed.1} parent=1 // pred_check
      _
    $region15: #{_ddpg_forward_packed.1} parent=1 // pred_check_branch
      %35 = sbr.rel (0) target = $region17
    $region16: #{_ddpg_forward_packed.1} parent=1 // pred_region
      %36 = dma.done [#allocation5], 128
    $region17: #{_ddpg_forward_packed.1} parent=1 // pred_fallthru
      _
    %v37 = vld [vmem:[#allocation2 + $0x180] sm:$0xff]
    %v38 = vld [vmem:[#allocation4] sm:$0x1]
    %v39 = vld [vmem:[#allocation4 + $0x1] sm:$0x1]
    %v40 = vld [vmem:[#allocation2] sm:$0xff]
    %v41 = vld [vmem:[#allocation2 + $0x8] sm:$0xff]
    %v42 = vld [vmem:[#allocation2 + $0x10] sm:$0xff]
    %v43 = vld [vmem:[#allocation2 + $0x18] sm:$0xff]
    %v44 = vld [vmem:[#allocation2 + $0x20] sm:$0xff]
    %v45 = vld [vmem:[#allocation2 + $0x28] sm:$0xff]
    %v46 = vld [vmem:[#allocation2 + $0x30] sm:$0xff]
    %v47 = vld [vmem:[#allocation2 + $0x38] sm:$0xff]
    %v48 = vld [vmem:[#allocation2 + $0x40] sm:$0xff]
    %v49 = vld [vmem:[#allocation2 + $0x48] sm:$0xff]
    %v50 = vld [vmem:[#allocation2 + $0x50] sm:$0xff]
    %v51 = vld [vmem:[#allocation2 + $0x58] sm:$0xff]
    %v52 = vld [vmem:[#allocation2 + $0x60] sm:$0xff]
    %v53 = vld [vmem:[#allocation2 + $0x68] sm:$0xff]
    %v54 = vld [vmem:[#allocation2 + $0x70] sm:$0xff]
    %v55 = vld [vmem:[#allocation2 + $0x78] sm:$0xff]
    %56 = vmatprep.subr.mxu0 0.0
    %57 = vmatpush1.msra.mxu0 %v40
    %58 = vmatprep.subr.mxu0 0.0
    %59 = vmatpush1.msra.mxu0 %v41
    %60 = vmatprep.subr.mxu0 0.0
    %61 = vmatpush1.msra.mxu0 %v42
    %62 = vmatprep.subr.mxu0 0.0
    %63 = vmatpush1.msra.mxu0 %v43
    %64 = vmatprep.subr.mxu0 0.0
    %65 = vmatpush1.msra.mxu0 %v44
    %66 = vmatprep.subr.mxu0 0.0
    %67 = vmatpush1.msra.mxu0 %v45
    %68 = vmatprep.subr.mxu0 0.0
    %69 = vmatpush1.msra.mxu0 %v46
    %70 = vmatprep.subr.mxu0 0.0
    %71 = vmatpush1.msra.mxu0 %v47
    %72 = vmatprep.subr.mxu0 0.0
    %73 = vmatpush1.msra.mxu0 %v48
    %74 = vmatprep.subr.mxu0 0.0
    %75 = vmatpush1.msra.mxu0 %v49
    %76 = vmatprep.subr.mxu0 0.0
    %77 = vmatpush1.msra.mxu0 %v50
    %78 = vmatprep.subr.mxu0 0.0
    %79 = vmatpush1.msra.mxu0 %v51
    %80 = vmatprep.subr.mxu0 0.0
    %81 = vmatpush1.msra.mxu0 %v52
    %82 = vmatprep.subr.mxu0 0.0
    %83 = vmatpush1.msra.mxu0 %v53
    %84 = vmatprep.subr.mxu0 0.0
    %85 = vmatpush1.msra.mxu0 %v54
    %86 = vmatprep.subr.mxu0 0.0
    %87 = vmatpush1.msra.mxu0 %v55
    %88 = vmatprep.subr.mxu0 0.0
    %89 = vmatpush1.msra.mxu0 0.0
    %90 = vmatprep.subr.mxu0 0.0
    %91 = vmatpush1.msra.mxu0 0.0
    %92 = vmatprep.subr.mxu0 0.0
    %93 = vmatpush1.msra.mxu0 0.0
    %94 = vmatprep.subr.mxu0 0.0
    %95 = vmatpush1.msra.mxu0 0.0
    %96 = vmatprep.subr.mxu0 0.0
    %97 = vmatpush1.msra.mxu0 0.0
    %98 = vmatprep.subr.mxu0 0.0
    %99 = vmatpush1.msra.mxu0 0.0
    %100 = vmatprep.subr.mxu0 0.0
    %101 = vmatpush1.msra.mxu0 0.0
    %102 = vmatprep.subr.mxu0 0.0
    %103 = vmatpush1.msra.mxu0 0.0
    %104 = vmatprep.subr.mxu0 0.0
    %105 = vmatpush1.msra.mxu0 0.0
    %106 = vmatprep.subr.mxu0 0.0
    %107 = vmatpush1.msra.mxu0 0.0
    %108 = vmatprep.subr.mxu0 0.0
    %109 = vmatpush1.msra.mxu0 0.0
    %110 = vmatprep.subr.mxu0 0.0
    %111 = vmatpush1.msra.mxu0 0.0
    %112 = vmatprep.subr.mxu0 0.0
    %113 = vmatpush1.msra.mxu0 0.0
    %114 = vmatprep.subr.mxu0 0.0
    %115 = vmatpush1.msra.mxu0 0.0
    %116 = vmatprep.subr.mxu0 0.0
    %117 = vmatpush1.msra.mxu0 0.0
    %118 = vmatprep.subr.mxu0 0.0
    %119 = vmatpush1.msra.mxu0 0.0
    %120 = vmatprep.mubr.f32.mxu0 0.0
    %121 = vmatmul.mubr.f32.gmra.mrb[0].mxu0 %v38
    %v122 = vpop.f32.mrb[0].mxu0
    %v123 = vadd.f32 %v37, %v122
    %v124 = vpop.f32.mrb[0].mxu0
    %125 = vdwg.mxu0
    %v126 = vmax.f32 %v123, 0.0
    %v127 = vld [vmem:[#allocation2 + $0x80] sm:$0xff]
    %v128 = vld [vmem:[#allocation2 + $0x88] sm:$0xff]
    %v129 = vld [vmem:[#allocation2 + $0x90] sm:$0xff]
    %v130 = vld [vmem:[#allocation2 + $0x98] sm:$0xff]
    %v131 = vld [vmem:[#allocation2 + $0xa0] sm:$0xff]
    %v132 = vld [vmem:[#allocation2 + $0xa8] sm:$0xff]
    %v133 = vld [vmem:[#allocation2 + $0xb0] sm:$0xff]
    %v134 = vld [vmem:[#allocation2 + $0xb8] sm:$0xff]
    %v135 = vld [vmem:[#allocation2 + $0xc0] sm:$0xff]
    %v136 = vld [vmem:[#allocation2 + $0xc8] sm:$0xff]
    %v137 = vld [vmem:[#allocation2 + $0xd0] sm:$0xff]
    %v138 = vld [vmem:[#allocation2 + $0xd8] sm:$0xff]
    %v139 = vld [vmem:[#allocation2 + $0xe0] sm:$0xff]
    %v140 = vld [vmem:[#allocation2 + $0xe8] sm:$0xff]
    %v141 = vld [vmem:[#allocation2 + $0xf0] sm:$0xff]
    %v142 = vld [vmem:[#allocation2 + $0xf8] sm:$0xff]
    %v144 = vrot.slane %v37, 1
    %146 = vmatprep.subr.mxu0 0.0
    %147 = vmatpush1.msra.mxu0 %v127
    %148 = vmatprep.subr.mxu0 0.0
    %149 = vmatpush1.msra.mxu0 %v128
    %150 = vmatprep.subr.mxu0 0.0
    %151 = vmatpush1.msra.mxu0 %v129
    %152 = vmatprep.subr.mxu0 0.0
    %153 = vmatpush1.msra.mxu0 %v130
    %154 = vmatprep.subr.mxu0 0.0
    %155 = vmatpush1.msra.mxu0 %v131
    %156 = vmatprep.subr.mxu0 0.0
    %157 = vmatpush1.msra.mxu0 %v132
    %158 = vmatprep.subr.mxu0 0.0
    %159 = vmatpush1.msra.mxu0 %v133
    %160 = vmatprep.subr.mxu0 0.0
    %161 = vmatpush1.msra.mxu0 %v134
    %162 = vmatprep.subr.mxu0 0.0
    %163 = vmatpush1.msra.mxu0 %v135
    %164 = vmatprep.subr.mxu0 0.0
    %165 = vmatpush1.msra.mxu0 %v136
    %166 = vmatprep.subr.mxu0 0.0
    %167 = vmatpush1.msra.mxu0 %v137
    %168 = vmatprep.subr.mxu0 0.0
    %169 = vmatpush1.msra.mxu0 %v138
    %170 = vmatprep.subr.mxu0 0.0
    %171 = vmatpush1.msra.mxu0 %v139
    %172 = vmatprep.subr.mxu0 0.0
    %173 = vmatpush1.msra.mxu0 %v140
    %174 = vmatprep.subr.mxu0 0.0
    %175 = vmatpush1.msra.mxu0 %v141
    %176 = vmatprep.subr.mxu0 0.0
    %177 = vmatpush1.msra.mxu0 %v142
    %178 = vmatprep.subr.mxu0 0.0
    %179 = vmatpush1.msra.mxu0 0.0
    %180 = vmatprep.subr.mxu0 0.0
    %181 = vmatpush1.msra.mxu0 0.0
    %182 = vmatprep.subr.mxu0 0.0
    %183 = vmatpush1.msra.mxu0 0.0
    %184 = vmatprep.subr.mxu0 0.0
    %185 = vmatpush1.msra.mxu0 0.0
    %186 = vmatprep.subr.mxu0 0.0
    %187 = vmatpush1.msra.mxu0 0.0
    %188 = vmatprep.subr.mxu0 0.0
    %189 = vmatpush1.msra.mxu0 0.0
    %190 = vmatprep.subr.mxu0 0.0
    %191 = vmatpush1.msra.mxu0 0.0
    %192 = vmatprep.subr.mxu0 0.0
    %193 = vmatpush1.msra.mxu0 0.0
    %194 = vmatprep.subr.mxu0 0.0
    %195 = vmatpush1.msra.mxu0 0.0
    %196 = vmatprep.subr.mxu0 0.0
    %197 = vmatpush1.msra.mxu0 0.0
    %198 = vmatprep.subr.mxu0 0.0
    %199 = vmatpush1.msra.mxu0 0.0
    %200 = vmatprep.subr.mxu0 0.0
    %201 = vmatpush1.msra.mxu0 0.0
    %202 = vmatprep.subr.mxu0 0.0
    %203 = vmatpush1.msra.mxu0 0.0
    %204 = vmatprep.subr.mxu0 0.0
    %205 = vmatpush1.msra.mxu0 0.0
    %206 = vmatprep.subr.mxu0 0.0
    %207 = vmatpush1.msra.mxu0 0.0
    %208 = vmatprep.subr.mxu0 0.0
    %209 = vmatpush1.msra.mxu0 0.0
    %210 = vmatprep.mubr.f32.mxu0 0.0
    %211 = vmatmul.mubr.f32.gmra.mrb[0].mxu0 %v126
    %v212 = vpop.f32.mrb[0].mxu0
    %v213 = vadd.f32 %v144, %v212
    %v214 = vpop.f32.mrb[0].mxu0
    %215 = vdwg.mxu0
    %v216 = vmax.f32 %v213, 0.0
    %v217 = vld [vmem:[#allocation2 + $0x100] sm:$0xff]
    %v218 = vld [vmem:[#allocation2 + $0x108] sm:$0xff]
    %v219 = vld [vmem:[#allocation2 + $0x110] sm:$0xff]
    %v220 = vld [vmem:[#allocation2 + $0x118] sm:$0xff]
    %v221 = vld [vmem:[#allocation2 + $0x120] sm:$0xff]
    %v222 = vld [vmem:[#allocation2 + $0x128] sm:$0xff]
    %v223 = vld [vmem:[#allocation2 + $0x130] sm:$0xff]
    %v224 = vld [vmem:[#allocation2 + $0x138] sm:$0xff]
    %v225 = vld [vmem:[#allocation2 + $0x140] sm:$0xff]
    %v226 = vld [vmem:[#allocation2 + $0x148] sm:$0xff]
    %v227 = vld [vmem:[#allocation2 + $0x150] sm:$0xff]
    %v228 = vld [vmem:[#allocation2 + $0x158] sm:$0xff]
    %v229 = vld [vmem:[#allocation2 + $0x160] sm:$0xff]
    %v230 = vld [vmem:[#allocation2 + $0x168] sm:$0xff]
    %v231 = vld [vmem:[#allocation2 + $0x170] sm:$0xff]
    %v232 = vld [vmem:[#allocation2 + $0x178] sm:$0xff]
    %v233 = vrot.slane %v37, 2
    %235 = vmatprep.subr.mxu0 0.0
    %236 = vmatpush1.msra.mxu0 %v217
    %237 = vmatprep.subr.mxu0 0.0
    %238 = vmatpush1.msra.mxu0 %v218
    %239 = vmatprep.subr.mxu0 0.0
    %240 = vmatpush1.msra.mxu0 %v219
    %241 = vmatprep.subr.mxu0 0.0
    %242 = vmatpush1.msra.mxu0 %v220
    %243 = vmatprep.subr.mxu0 0.0
    %244 = vmatpush1.msra.mxu0 %v221
    %245 = vmatprep.subr.mxu0 0.0
    %246 = vmatpush1.msra.mxu0 %v222
    %247 = vmatprep.subr.mxu0 0.0
    %248 = vmatpush1.msra.mxu0 %v223
    %249 = vmatprep.subr.mxu0 0.0
    %250 = vmatpush1.msra.mxu0 %v224
    %251 = vmatprep.subr.mxu0 0.0
    %252 = vmatpush1.msra.mxu0 %v225
    %253 = vmatprep.subr.mxu0 0.0
    %254 = vmatpush1.msra.mxu0 %v226
    %255 = vmatprep.subr.mxu0 0.0
    %256 = vmatpush1.msra.mxu0 %v227
    %257 = vmatprep.subr.mxu0 0.0
    %258 = vmatpush1.msra.mxu0 %v228
    %259 = vmatprep.subr.mxu0 0.0
    %260 = vmatpush1.msra.mxu0 %v229
    %261 = vmatprep.subr.mxu0 0.0
    %262 = vmatpush1.msra.mxu0 %v230
    %263 = vmatprep.subr.mxu0 0.0
    %264 = vmatpush1.msra.mxu0 %v231
    %265 = vmatprep.subr.mxu0 0.0
    %266 = vmatpush1.msra.mxu0 %v232
    %267 = vmatprep.subr.mxu0 0.0
    %268 = vmatpush1.msra.mxu0 0.0
    %269 = vmatprep.subr.mxu0 0.0
    %270 = vmatpush1.msra.mxu0 0.0
    %271 = vmatprep.subr.mxu0 0.0
    %272 = vmatpush1.msra.mxu0 0.0
    %273 = vmatprep.subr.mxu0 0.0
    %274 = vmatpush1.msra.mxu0 0.0
    %275 = vmatprep.subr.mxu0 0.0
    %276 = vmatpush1.msra.mxu0 0.0
    %277 = vmatprep.subr.mxu0 0.0
    %278 = vmatpush1.msra.mxu0 0.0
    %279 = vmatprep.subr.mxu0 0.0
    %280 = vmatpush1.msra.mxu0 0.0
    %281 = vmatprep.subr.mxu0 0.0
    %282 = vmatpush1.msra.mxu0 0.0
    %283 = vmatprep.subr.mxu0 0.0
    %284 = vmatpush1.msra.mxu0 0.0
    %285 = vmatprep.subr.mxu0 0.0
    %286 = vmatpush1.msra.mxu0 0.0
    %287 = vmatprep.subr.mxu0 0.0
    %288 = vmatpush1.msra.mxu0 0.0
    %289 = vmatprep.subr.mxu0 0.0
    %290 = vmatpush1.msra.mxu0 0.0
    %291 = vmatprep.subr.mxu0 0.0
    %292 = vmatpush1.msra.mxu0 0.0
    %293 = vmatprep.subr.mxu0 0.0
    %294 = vmatpush1.msra.mxu0 0.0
    %295 = vmatprep.subr.mxu0 0.0
    %296 = vmatpush1.msra.mxu0 0.0
    %297 = vmatprep.subr.mxu0 0.0
    %298 = vmatpush1.msra.mxu0 0.0
    %299 = vmatprep.mubr.f32.mxu0 0.0
    %300 = vmatmul.mubr.f32.gmra.mrb[0].mxu0 %v216
    %v301 = vpop.f32.mrb[0].mxu0
    %v302 = vadd.f32 %v233, %v301
    %v303 = vpop.f32.mrb[0].mxu0
    %304 = vdwg.mxu0
    %v305 = vtanh.pop %v302
    %v306 = vadd.f32 %v305, %v39
    %v308 = vrot.slane %v306, 5
    %v310 = vmax.f32 %v37, %v308
    %v312 = vrot.slane %v310, 7
    %v314 = vmin.f32 %v37, %v312
    %315 = vst [vmem:[%s2 - $0x4] sm:$0x10] %v314
    // Predicated region
    $region18: #{_ddpg_forward_packed.1} parent=1 // pred_check
      _
    $region19: #{_ddpg_forward_packed.1} parent=1 // pred_check_branch
      %317 = sbr.rel (0) target = $region21
    $region20: #{_ddpg_forward_packed.1} parent=1 // pred_region
      _
    $region21: #{_ddpg_forward_packed.1} parent=1 // pred_fallthru
      _
    // Predicated region
    $region22: #{_ddpg_forward_packed.1} parent=1 // pred_check
      _
    $region23: #{_ddpg_forward_packed.1} parent=1 // pred_check_branch
      %319 = sbr.rel (0) target = $region25
    $region24: #{_ddpg_forward_packed.1} parent=1 // pred_region
      _
    $region25: #{_ddpg_forward_packed.1} parent=1 // pred_fallthru
      _
    %320 = vsyncpa [#allocation3], 1
    %321 = vsyncpa [#allocation5], 1

</llo_original>
